<compile_context>
chip_gen: v7x
topology: tpu7x:2x2x1
jax: 0.10.0
libtpu: 0.0.40
codegen_flags: <defaults>
</compile_context>

<pallas_src>
import numpy as np
import jax
import jax.numpy as jnp
from jax.experimental import pallas as pl
from jax.experimental.pallas import tpu as pltpu


def _round_up(x: int, m: int) -> int:
    return ((x + m - 1) // m) * m


def _fused_padded_haar_matrix(n_signal: int):
    """Build W of shape (N, (L+1)*max_len) such that x @ W is the zero-padded,
    stacked pywt.wavedec(x, 'db1') output, level-major [cA_L | cD_L | ... | cD_1],
    with level j occupying columns [j*max_len, j*max_len + len_j) and exact-zero
    padding columns elsewhere.  Built by running the Haar analysis cascade on the
    identity matrix in f64, then cast to f32."""
    L = int(np.log2(n_signal))
    max_len = n_signal // 2
    out_width = (L + 1) * max_len
    a = np.eye(n_signal, dtype=np.float64)
    details = []
    for _ in range(L):
        even = a[:, 0::2]
        odd = a[:, 1::2]
        details.append((even - odd) / np.sqrt(2.0))   # cD of this level
        a = (even + odd) / np.sqrt(2.0)               # cA carried to next level
    blocks = [a] + details[::-1]                      # [cA_L, cD_L, ..., cD_1]
    W = np.zeros((n_signal, out_width), dtype=np.float64)
    for j, blk in enumerate(blocks):
        W[:, j * max_len: j * max_len + blk.shape[1]] = blk
    return W.astype(np.float32), L, max_len, out_width


def _haar_wavedec_kernel(x_ref, w_ref, out_ref):
    # In-kernel upcast: lets callers pass bf16/etc. without a separate
    # wrapper-side cast pass over HBM (no-op for f32 inputs).
    x = x_ref[...].astype(jnp.float32)
    # Single lane-dense store: padded layout is baked into W, so this MXU pass
    # is the only write to out_ref (no zero-init, no per-level slice copies).
    out_ref[...] = jnp.dot(x, w_ref[...], preferred_element_type=jnp.float32)


def _run_pallas(signals_2d, W, TB, *, single_buffer_w):
    B, N = signals_2d.shape
    out_width = W.shape[1]
    grid = (pl.cdiv(B, TB),)

    w_spec_kwargs = {}
    w_bufs = 2
    if single_buffer_w and hasattr(pl, "Buffered"):
        # W's index_map is grid-invariant; a second pipeline buffer is waste.
        w_spec_kwargs["pipeline_mode"] = pl.Buffered(1)
        w_bufs = 1

    # Correct VMEM accounting: x / out tiles are double-buffered by Pallas,
    # W uses w_bufs copies; add a small margin for internal scratch.
    x_itemsize = jnp.dtype(signals_2d.dtype).itemsize
    vmem_bytes = (2 * TB * N * x_itemsize
                  + w_bufs * N * out_width * 4
                  + 2 * TB * out_width * 4)
    vmem_limit = int(min(128 << 20, max(16 << 20, vmem_bytes + (4 << 20))))

    return pl.pallas_call(
        _haar_wavedec_kernel,
        out_shape=jax.ShapeDtypeStruct((B, out_width), jnp.float32),
        grid=grid,
        in_specs=[
            pl.BlockSpec((TB, N), lambda i: (i, 0)),
            pl.BlockSpec((N, out_width), lambda i: (0, 0), **w_spec_kwargs),
        ],
        out_specs=pl.BlockSpec((TB, out_width), lambda i: (i, 0)),
        compiler_params=pltpu.CompilerParams(
            dimension_semantics=("parallel",),
            vmem_limit_bytes=vmem_limit,
        ),
    )(signals_2d, W)


def wavelet_matrix_layer(signals: jax.Array) -> jax.Array:
    """Equivalent of WaveletMatrixLayer.forward for 'db1' on (B, N) signals."""
    B, N = signals.shape
    assert N >= 2 and (N & (N - 1)) == 0, "signal length must be a power of two"

    W_np, L, max_len, out_width = _fused_padded_haar_matrix(N)
    W = jnp.asarray(W_np)

    # Batch tiling: fill the 256-wide MXU M dimension, but keep >= 2 grid steps
    # whenever possible so both v7x TensorCores get work on the "parallel" axis.
    itemsize = jnp.dtype(signals.dtype).itemsize
    sublane = max(8, 32 // max(1, itemsize))          # 8 (f32), 16 (bf16), 32 (i8)
    TB = min(256, _round_up(pl.cdiv(B, 2), sublane))
    if TB >= B:
        TB = B                                        # single full-batch tile

    try:
        out = _run_pallas(signals, W, TB, single_buffer_w=True)
    except Exception:
        # Fallback for JAX versions where single-buffering via pl.Buffered(1)
        # is unavailable; identical kernel with default (double) buffering.
        out = _run_pallas(signals, W, TB, single_buffer_w=False)

    # Free contiguous reshape (no transpose): (B, (L+1)*max_len) -> (B, L+1, max_len).
    return out.reshape(B, L + 1, max_len)


def _ref_wavedec_haar(x: np.ndarray) -> np.ndarray:
    """Pure-numpy reference of pywt.wavedec(x, 'db1') + zero-pad + stack."""
    inv_sqrt2 = np.float32(1.0 / np.sqrt(2.0))
    x = np.asarray(x, np.float32)
    B, N = x.shape
    L = int(np.log2(N))
    max_len = N // 2
    out = np.zeros((B, L + 1, max_len), np.float32)
    a = x
    for k in range(L):
        even = a[:, 0::2]
        odd = a[:, 1::2]
        cD = (even - odd) * inv_sqrt2
        cA = (even + odd) * inv_sqrt2
        out[:, L - k, :cD.shape[1]] = cD
        a = cA
    out[:, 0, :a.shape[1]] = a[:, :]
    return out


if __name__ == "__main__":
    # Small shape consistent with the module: batch of 2 signals of length 16
    # -> output (2, 5, 8) = (B, L+1, max_len).
    B, N = 2, 16
    signals = jax.random.normal(jax.random.PRNGKey(0), (B, N), dtype=jnp.float32)
    result = jax.block_until_ready(wavelet_matrix_layer(signals))
    expected = _ref_wavedec_haar(np.asarray(signals))
    assert result.shape == expected.shape, (result.shape, expected.shape)
    np.testing.assert_allclose(np.asarray(result), expected, rtol=1e-5, atol=1e-5)

    # Second (still small) shape that exercises a multi-step "parallel" grid and
    # a partial last batch tile (B=20 > TB=16), per the review's validation ask.
    B2, N2 = 20, 64
    signals2 = jax.random.normal(jax.random.PRNGKey(0), (B2, N2), dtype=jnp.float32)
    result2 = jax.block_until_ready(wavelet_matrix_layer(signals2))
    expected2 = _ref_wavedec_haar(np.asarray(signals2))
    assert result2.shape == expected2.shape, (result2.shape, expected2.shape)
    np.testing.assert_allclose(np.asarray(result2), expected2, rtol=2e-5, atol=3e-5)

    print("KERNEL_OK")
</pallas_src>

<mosaic_0001>
module attributes {stable_mosaic.version = 11 : i64} {
  func.func @_haar_wavedec_kernel(%arg0: i32, %arg1: memref<2x16xf32, #tpu.memory_space<vmem>>, %arg2: memref<16x40xf32, #tpu.memory_space<vmem>>, %arg3: memref<2x40xf32, #tpu.memory_space<vmem>>) attributes {dimension_semantics = [#tpu.dimension_semantics<parallel>], iteration_bounds = array<i64: 1>, scalar_prefetch = 0 : i64, scratch_operands = 0 : i64, tpu.core_type = #tpu.core_type<tc>, window_params = [{transform_indices = @transform_0, window_bounds = array<i64: 2, 16>}, {pipeline_mode = #tpu.pipeline_mode<synchronous>, transform_indices = @transform_1, window_bounds = array<i64: 16, 40>}, {transform_indices = @transform_2, window_bounds = array<i64: 2, 40>}]} {
    %c0 = arith.constant 0 : index
    %c0_0 = arith.constant 0 : index
    %0 = vector.load %arg1[%c0, %c0_0] : memref<2x16xf32, #tpu.memory_space<vmem>>, vector<2x16xf32>
    %c0_1 = arith.constant 0 : index
    %c0_2 = arith.constant 0 : index
    %1 = vector.load %arg2[%c0_1, %c0_2] : memref<16x40xf32, #tpu.memory_space<vmem>>, vector<16x40xf32>
    %cst = arith.constant dense<0.000000e+00> : vector<2x40xf32>
    %2 = tpu.matmul %0, %1, %cst {dimension_numbers = #tpu.dot_dimension_numbers<[1], [0], [0], [1], [0, 0, 1, 1], [], []>} : vector<2x16xf32>, vector<16x40xf32>, vector<2x40xf32> -> vector<2x40xf32>
    %c0_3 = arith.constant 0 : index
    %c0_4 = arith.constant 0 : index
    %3 = vector.load %arg3[%c0_3, %c0_4] : memref<2x40xf32, #tpu.memory_space<vmem>>, vector<2x40xf32>
    tpu.vector_store %arg3[%c0_3, %c0_4], %2 {strides = array<i32>} : memref<2x40xf32, #tpu.memory_space<vmem>>, vector<2x40xf32>,
    return
  }
  func.func @transform_0(%arg0: i32) -> (i32, i32) {
    %c0_i32 = arith.constant 0 : i32
    %c0_i32_0 = arith.constant 0 : i32
    return %arg0, %c0_i32 : i32, i32
  }
  func.func @transform_1(%arg0: i32) -> (i32, i32) {
    %c0_i32 = arith.constant 0 : i32
    %c0_i32_0 = arith.constant 0 : i32
    %c0_i32_1 = arith.constant 0 : i32
    return %c0_i32, %c0_i32_0 : i32, i32
  }
  func.func @transform_2(%arg0: i32) -> (i32, i32) {
    %c0_i32 = arith.constant 0 : i32
    %c0_i32_0 = arith.constant 0 : i32
    return %arg0, %c0_i32 : i32, i32
  }
}

module attributes {stable_mosaic.version = 11 : i64} {
  func.func @_haar_wavedec_kernel(%arg0: i32, %arg1: memref<2x16xf32, #tpu.memory_space<vmem>>, %arg2: memref<16x40xf32, #tpu.memory_space<vmem>>, %arg3: memref<2x40xf32, #tpu.memory_space<vmem>>) attributes {dimension_semantics = [#tpu.dimension_semantics<parallel>], iteration_bounds = array<i64: 1>, scalar_prefetch = 0 : i64, scratch_operands = 0 : i64, tpu.core_type = #tpu.core_type<tc>, window_params = [{transform_indices = @transform_0, window_bounds = array<i64: 2, 16>}, {pipeline_mode = #tpu.pipeline_mode<synchronous>, transform_indices = @transform_1, window_bounds = array<i64: 16, 40>}, {transform_indices = @transform_2, window_bounds = array<i64: 2, 40>}]} {
    %c0 = arith.constant 0 : index
    %c0_0 = arith.constant 0 : index
    %0 = vector.load %arg1[%c0, %c0_0] : memref<2x16xf32, #tpu.memory_space<vmem>>, vector<2x16xf32>
    %c0_1 = arith.constant 0 : index
    %c0_2 = arith.constant 0 : index
    %1 = vector.load %arg2[%c0_1, %c0_2] : memref<16x40xf32, #tpu.memory_space<vmem>>, vector<16x40xf32>
    %cst = arith.constant dense<0.000000e+00> : vector<2x40xf32>
    %2 = tpu.matmul %0, %1, %cst {dimension_numbers = #tpu.dot_dimension_numbers<[1], [0], [0], [1], [0, 0, 1, 1], [], []>} : vector<2x16xf32>, vector<16x40xf32>, vector<2x40xf32> -> vector<2x40xf32>
    %c0_3 = arith.constant 0 : index
    %c0_4 = arith.constant 0 : index
    %3 = vector.load %arg3[%c0_3, %c0_4] : memref<2x40xf32, #tpu.memory_space<vmem>>, vector<2x40xf32>
    tpu.vector_store %arg3[%c0_3, %c0_4], %2 {strides = array<i32>} : memref<2x40xf32, #tpu.memory_space<vmem>>, vector<2x40xf32>,
    return
  }
  func.func @transform_0(%arg0: i32) -> (i32, i32) {
    %c0_i32 = arith.constant 0 : i32
    %c0_i32_0 = arith.constant 0 : i32
    return %arg0, %c0_i32 : i32, i32
  }
  func.func @transform_1(%arg0: i32) -> (i32, i32) {
    %c0_i32 = arith.constant 0 : i32
    %c0_i32_0 = arith.constant 0 : i32
    %c0_i32_1 = arith.constant 0 : i32
    return %c0_i32, %c0_i32_0 : i32, i32
  }
  func.func @transform_2(%arg0: i32) -> (i32, i32) {
    %c0_i32 = arith.constant 0 : i32
    %c0_i32_0 = arith.constant 0 : i32
    return %arg0, %c0_i32 : i32, i32
  }
}

</mosaic_0001>

<llo_original>
// kernel: tpu_custom_call.1
$region0: #{tpu_custom_call.1}
  #allocation0 [shape = 'u32[]', space=smem, size = 0x4, offset = 0x4, fixed_abs, tag = 'smem constant byte address 0x4 - core index']
  #allocation1 [shape = 'u32[144,128]{1,0:T(1,128)}', space=vmem, size = 0x12000, scoped, tag = 'internal scratch']
  %s0 = inlined_call_operand.hbm [shape: f32[2,16], index: 0, kind: input, shape index: {}]
  %s1 = inlined_call_operand.hbm [shape: f32[16,40], index: 1, kind: input, shape index: {}]
  %s2 = inlined_call_operand.hbm [shape: f32[2,40], index: 2, kind: output, shape index: {}]
  %s3 = sld [smem:[#allocation0]]
  $region26: #{tpu_custom_call.1} parent=0
    _
  %s5 = ssub.s32 1, %s3
  %s6 = scalar_select 0, %s5, %s3
  $region1: #{tpu_custom_call.1} parent=0
    #allocation2 [shape = 'u8[1024]{0}', space=vmem, size = 0x400, scoped, tag = 'input window, operand 0, single buffered']
    #allocation3 [shape = 's32[1]{0}', space=sflag, size = 0x4, scoped, tag = 'scoped memory for tpu_custom_call.1']
    #allocation4 [shape = 's32[1]{0}', space=sflag, size = 0x4, scoped, tag = 'scoped memory for tpu_custom_call.1']
    #allocation5 [shape = 'u8[8192]{0}', space=vmem, size = 0x2000, scoped, tag = 'input window, operand 1, single buffered']
    #allocation6 [shape = 's32[1]{0}', space=sflag, size = 0x4, scoped, tag = 'scoped memory for tpu_custom_call.1']
    #allocation7 [shape = 'u8[1024]{0}', space=vmem, size = 0x400, scoped, tag = 'output window, operand 0, single buffered']
    %7 = vsyncpa [#allocation3], 0
    %8 = vsyncpa [#allocation6], 0
    %9 = vsyncpa [#allocation4], 0
    // Predicated region
    $region2: #{tpu_custom_call.1} parent=1 // pred_check
      _
    $region3: #{tpu_custom_call.1} parent=1 // pred_check_branch
      %11 = sbr.rel (0) target = $region5
    $region4: #{tpu_custom_call.1} parent=1 // pred_region
      %s13 = ssub.s32 32, 32
      %14 = vsyncadd [#allocation3], %s13
      %s16 = sshll.u32 [#allocation2], 4
      %s17 = int_to_ptr.vmem [resolvable:$true] %s16
      %19 = dma.hbm_to_vmem [thread:$0]  %s0, 32, %s17, [#allocation3]
    $region5: #{tpu_custom_call.1} parent=1 // pred_fallthru
      _
    // Predicated region
    $region6: #{tpu_custom_call.1} parent=1 // pred_check
      _
    $region7: #{tpu_custom_call.1} parent=1 // pred_check_branch
      %21 = sbr.rel (0) target = $region9
    $region8: #{tpu_custom_call.1} parent=1 // pred_region
      %s23 = ssub.s32 256, 256
      %24 = vsyncadd [#allocation6], %s23
      %s25 = sshll.u32 [#allocation5], 4
      %s26 = int_to_ptr.vmem [resolvable:$true] %s25
      %31 = dma.hbm_to_vmem [thread:$0]  %s1, 256, %s26, [#allocation6], 128, 128, 8
    $region9: #{tpu_custom_call.1} parent=1 // pred_fallthru
      _
    // Predicated region
    $region10: #{tpu_custom_call.1} parent=1 // pred_check
      _
    $region11: #{tpu_custom_call.1} parent=1 // pred_check_branch
      %33 = sbr.rel (0) target = $region13
    $region12: #{tpu_custom_call.1} parent=1 // pred_region
      %34 = dma.done [#allocation3], 32
    $region13: #{tpu_custom_call.1} parent=1 // pred_fallthru
      _
    // Predicated region
    $region14: #{tpu_custom_call.1} parent=1 // pred_check
      _
    $region15: #{tpu_custom_call.1} parent=1 // pred_check_branch
      %36 = sbr.rel (0) target = $region17
    $region16: #{tpu_custom_call.1} parent=1 // pred_region
      %37 = dma.done [#allocation6], 256
    $region17: #{tpu_custom_call.1} parent=1 // pred_fallthru
      _
    %v38 = vld [vmem:[#allocation2] sm:$0x3]
    %v39 = vld [vmem:[#allocation5] sm:$0xff]
    %v40 = vld [vmem:[#allocation5 + $0x8] sm:$0xff]
    %vm41 = vcmask 130048
    %v43 = vsel %vm41, %v38, 0
    %45 = vmatprep.subr.mxu0 0.0
    %46 = vmatpush1.msra.mxu0 %v39
    %47 = vmatprep.subr.mxu0 0.0
    %48 = vmatpush1.msra.mxu0 %v40
    %49 = vmatprep.subr.mxu0 0.0
    %50 = vmatpush1.msra.mxu0 0.0
    %51 = vmatprep.subr.mxu0 0.0
    %52 = vmatpush1.msra.mxu0 0.0
    %53 = vmatprep.subr.mxu0 0.0
    %54 = vmatpush1.msra.mxu0 0.0
    %55 = vmatprep.subr.mxu0 0.0
    %56 = vmatpush1.msra.mxu0 0.0
    %57 = vmatprep.subr.mxu0 0.0
    %58 = vmatpush1.msra.mxu0 0.0
    %59 = vmatprep.subr.mxu0 0.0
    %60 = vmatpush1.msra.mxu0 0.0
    %61 = vmatprep.subr.mxu0 0.0
    %62 = vmatpush1.msra.mxu0 0.0
    %63 = vmatprep.subr.mxu0 0.0
    %64 = vmatpush1.msra.mxu0 0.0
    %65 = vmatprep.subr.mxu0 0.0
    %66 = vmatpush1.msra.mxu0 0.0
    %67 = vmatprep.subr.mxu0 0.0
    %68 = vmatpush1.msra.mxu0 0.0
    %69 = vmatprep.subr.mxu0 0.0
    %70 = vmatpush1.msra.mxu0 0.0
    %71 = vmatprep.subr.mxu0 0.0
    %72 = vmatpush1.msra.mxu0 0.0
    %73 = vmatprep.subr.mxu0 0.0
    %74 = vmatpush1.msra.mxu0 0.0
    %75 = vmatprep.subr.mxu0 0.0
    %76 = vmatpush1.msra.mxu0 0.0
    %77 = vmatprep.subr.mxu0 0.0
    %78 = vmatpush1.msra.mxu0 0.0
    %79 = vmatprep.subr.mxu0 0.0
    %80 = vmatpush1.msra.mxu0 0.0
    %81 = vmatprep.subr.mxu0 0.0
    %82 = vmatpush1.msra.mxu0 0.0
    %83 = vmatprep.subr.mxu0 0.0
    %84 = vmatpush1.msra.mxu0 0.0
    %85 = vmatprep.subr.mxu0 0.0
    %86 = vmatpush1.msra.mxu0 0.0
    %87 = vmatprep.subr.mxu0 0.0
    %88 = vmatpush1.msra.mxu0 0.0
    %89 = vmatprep.subr.mxu0 0.0
    %90 = vmatpush1.msra.mxu0 0.0
    %91 = vmatprep.subr.mxu0 0.0
    %92 = vmatpush1.msra.mxu0 0.0
    %93 = vmatprep.subr.mxu0 0.0
    %94 = vmatpush1.msra.mxu0 0.0
    %95 = vmatprep.subr.mxu0 0.0
    %96 = vmatpush1.msra.mxu0 0.0
    %97 = vmatprep.subr.mxu0 0.0
    %98 = vmatpush1.msra.mxu0 0.0
    %99 = vmatprep.subr.mxu0 0.0
    %100 = vmatpush1.msra.mxu0 0.0
    %101 = vmatprep.subr.mxu0 0.0
    %102 = vmatpush1.msra.mxu0 0.0
    %103 = vmatprep.subr.mxu0 0.0
    %104 = vmatpush1.msra.mxu0 0.0
    %105 = vmatprep.subr.mxu0 0.0
    %106 = vmatpush1.msra.mxu0 0.0
    %107 = vmatprep.subr.mxu0 0.0
    %108 = vmatpush1.msra.mxu0 0.0
    %109 = vmatprep.mubr.f32.mxu0 0.0
    %110 = vmatmul.mubr.f32.gmra.mrb[0].mxu0 %v43
    %v111 = vpop.f32.mrb[0].mxu0
    %v112 = vadd.f32 0.0, %v111
    %v113 = vpop.f32.mrb[0].mxu0
    %114 = vdwg.mxu0
    %vm115 = vcmask 320512
    %116 = vst.msk [vmem:[#allocation7] sm:$0x3] %vm115, %v112
    // Predicated region
    $region18: #{tpu_custom_call.1} parent=1 // pred_check
      _
    $region19: #{tpu_custom_call.1} parent=1 // pred_check_branch
      %118 = sbr.rel (0) target = $region21
    $region20: #{tpu_custom_call.1} parent=1 // pred_region
      %s120 = ssub.s32 32, 32
      %121 = vsyncadd [#allocation4], %s120
      %s123 = sshll.u32 [#allocation7], 4
      %s124 = int_to_ptr.vmem [resolvable:$true] %s123
      %126 = dma.vmem_to_hbm [thread:$0]  %s124, 32, %s2, [#allocation4]
    $region21: #{tpu_custom_call.1} parent=1 // pred_fallthru
      _
    // Predicated region
    $region22: #{tpu_custom_call.1} parent=1 // pred_check
      _
    $region23: #{tpu_custom_call.1} parent=1 // pred_check_branch
      %128 = sbr.rel (0) target = $region25
    $region24: #{tpu_custom_call.1} parent=1 // pred_region
      %129 = dma.done [#allocation4], 32
    $region25: #{tpu_custom_call.1} parent=1 // pred_fallthru
      _
    %130 = vsyncpa [#allocation3], 1
    %131 = vsyncpa [#allocation6], 1
    %132 = vsyncpa [#allocation4], 1

// kernel: tpu_custom_call.1
$region0: #{tpu_custom_call.1}
  #allocation0 [shape = 'u32[]', space=smem, size = 0x4, offset = 0x4, fixed_abs, tag = 'smem constant byte address 0x4 - core index']
  #allocation1 [shape = 'u32[144,128]{1,0:T(1,128)}', space=vmem, size = 0x12000, scoped, tag = 'internal scratch']
  %s0 = inlined_call_operand.hbm [shape: f32[2,16], index: 0, kind: input, shape index: {}]
  %s1 = inlined_call_operand.hbm [shape: f32[16,40], index: 1, kind: input, shape index: {}]
  %s2 = inlined_call_operand.hbm [shape: f32[2,40], index: 2, kind: output, shape index: {}]
  %s3 = sld [smem:[#allocation0]]
  $region26: #{tpu_custom_call.1} parent=0
    _
  %s5 = ssub.s32 1, %s3
  %s6 = scalar_select 0, %s5, %s3
  $region1: #{tpu_custom_call.1} parent=0
    #allocation2 [shape = 'u8[1024]{0}', space=vmem, size = 0x400, scoped, tag = 'input window, operand 0, single buffered']
    #allocation3 [shape = 's32[1]{0}', space=sflag, size = 0x4, scoped, tag = 'scoped memory for tpu_custom_call.1']
    #allocation4 [shape = 's32[1]{0}', space=sflag, size = 0x4, scoped, tag = 'scoped memory for tpu_custom_call.1']
    #allocation5 [shape = 'u8[8192]{0}', space=vmem, size = 0x2000, scoped, tag = 'input window, operand 1, single buffered']
    #allocation6 [shape = 's32[1]{0}', space=sflag, size = 0x4, scoped, tag = 'scoped memory for tpu_custom_call.1']
    #allocation7 [shape = 'u8[1024]{0}', space=vmem, size = 0x400, scoped, tag = 'output window, operand 0, single buffered']
    %7 = vsyncpa [#allocation3], 0
    %8 = vsyncpa [#allocation6], 0
    %9 = vsyncpa [#allocation4], 0
    // Predicated region
    $region2: #{tpu_custom_call.1} parent=1 // pred_check
      _
    $region3: #{tpu_custom_call.1} parent=1 // pred_check_branch
      %11 = sbr.rel (0) target = $region5
    $region4: #{tpu_custom_call.1} parent=1 // pred_region
      %s13 = ssub.s32 32, 32
      %14 = vsyncadd [#allocation3], %s13
      %s16 = sshll.u32 [#allocation2], 4
      %s17 = int_to_ptr.vmem [resolvable:$true] %s16
      %19 = dma.hbm_to_vmem [thread:$0]  %s0, 32, %s17, [#allocation3]
    $region5: #{tpu_custom_call.1} parent=1 // pred_fallthru
      _
    // Predicated region
    $region6: #{tpu_custom_call.1} parent=1 // pred_check
      _
    $region7: #{tpu_custom_call.1} parent=1 // pred_check_branch
      %21 = sbr.rel (0) target = $region9
    $region8: #{tpu_custom_call.1} parent=1 // pred_region
      %s23 = ssub.s32 256, 256
      %24 = vsyncadd [#allocation6], %s23
      %s25 = sshll.u32 [#allocation5], 4
      %s26 = int_to_ptr.vmem [resolvable:$true] %s25
      %31 = dma.hbm_to_vmem [thread:$0]  %s1, 256, %s26, [#allocation6], 128, 128, 8
    $region9: #{tpu_custom_call.1} parent=1 // pred_fallthru
      _
    // Predicated region
    $region10: #{tpu_custom_call.1} parent=1 // pred_check
      _
    $region11: #{tpu_custom_call.1} parent=1 // pred_check_branch
      %33 = sbr.rel (0) target = $region13
    $region12: #{tpu_custom_call.1} parent=1 // pred_region
      %34 = dma.done [#allocation3], 32
    $region13: #{tpu_custom_call.1} parent=1 // pred_fallthru
      _
    // Predicated region
    $region14: #{tpu_custom_call.1} parent=1 // pred_check
      _
    $region15: #{tpu_custom_call.1} parent=1 // pred_check_branch
      %36 = sbr.rel (0) target = $region17
    $region16: #{tpu_custom_call.1} parent=1 // pred_region
      %37 = dma.done [#allocation6], 256
    $region17: #{tpu_custom_call.1} parent=1 // pred_fallthru
      _
    %v38 = vld [vmem:[#allocation2] sm:$0x3]
    %v39 = vld [vmem:[#allocation5] sm:$0xff]
    %v40 = vld [vmem:[#allocation5 + $0x8] sm:$0xff]
    %vm41 = vcmask 130048
    %v43 = vsel %vm41, %v38, 0
    %45 = vmatprep.subr.mxu0 0.0
    %46 = vmatpush1.msra.mxu0 %v39
    %47 = vmatprep.subr.mxu0 0.0
    %48 = vmatpush1.msra.mxu0 %v40
    %49 = vmatprep.subr.mxu0 0.0
    %50 = vmatpush1.msra.mxu0 0.0
    %51 = vmatprep.subr.mxu0 0.0
    %52 = vmatpush1.msra.mxu0 0.0
    %53 = vmatprep.subr.mxu0 0.0
    %54 = vmatpush1.msra.mxu0 0.0
    %55 = vmatprep.subr.mxu0 0.0
    %56 = vmatpush1.msra.mxu0 0.0
    %57 = vmatprep.subr.mxu0 0.0
    %58 = vmatpush1.msra.mxu0 0.0
    %59 = vmatprep.subr.mxu0 0.0
    %60 = vmatpush1.msra.mxu0 0.0
    %61 = vmatprep.subr.mxu0 0.0
    %62 = vmatpush1.msra.mxu0 0.0
    %63 = vmatprep.subr.mxu0 0.0
    %64 = vmatpush1.msra.mxu0 0.0
    %65 = vmatprep.subr.mxu0 0.0
    %66 = vmatpush1.msra.mxu0 0.0
    %67 = vmatprep.subr.mxu0 0.0
    %68 = vmatpush1.msra.mxu0 0.0
    %69 = vmatprep.subr.mxu0 0.0
    %70 = vmatpush1.msra.mxu0 0.0
    %71 = vmatprep.subr.mxu0 0.0
    %72 = vmatpush1.msra.mxu0 0.0
    %73 = vmatprep.subr.mxu0 0.0
    %74 = vmatpush1.msra.mxu0 0.0
    %75 = vmatprep.subr.mxu0 0.0
    %76 = vmatpush1.msra.mxu0 0.0
    %77 = vmatprep.subr.mxu0 0.0
    %78 = vmatpush1.msra.mxu0 0.0
    %79 = vmatprep.subr.mxu0 0.0
    %80 = vmatpush1.msra.mxu0 0.0
    %81 = vmatprep.subr.mxu0 0.0
    %82 = vmatpush1.msra.mxu0 0.0
    %83 = vmatprep.subr.mxu0 0.0
    %84 = vmatpush1.msra.mxu0 0.0
    %85 = vmatprep.subr.mxu0 0.0
    %86 = vmatpush1.msra.mxu0 0.0
    %87 = vmatprep.subr.mxu0 0.0
    %88 = vmatpush1.msra.mxu0 0.0
    %89 = vmatprep.subr.mxu0 0.0
    %90 = vmatpush1.msra.mxu0 0.0
    %91 = vmatprep.subr.mxu0 0.0
    %92 = vmatpush1.msra.mxu0 0.0
    %93 = vmatprep.subr.mxu0 0.0
    %94 = vmatpush1.msra.mxu0 0.0
    %95 = vmatprep.subr.mxu0 0.0
    %96 = vmatpush1.msra.mxu0 0.0
    %97 = vmatprep.subr.mxu0 0.0
    %98 = vmatpush1.msra.mxu0 0.0
    %99 = vmatprep.subr.mxu0 0.0
    %100 = vmatpush1.msra.mxu0 0.0
    %101 = vmatprep.subr.mxu0 0.0
    %102 = vmatpush1.msra.mxu0 0.0
    %103 = vmatprep.subr.mxu0 0.0
    %104 = vmatpush1.msra.mxu0 0.0
    %105 = vmatprep.subr.mxu0 0.0
    %106 = vmatpush1.msra.mxu0 0.0
    %107 = vmatprep.subr.mxu0 0.0
    %108 = vmatpush1.msra.mxu0 0.0
    %109 = vmatprep.mubr.f32.mxu0 0.0
    %110 = vmatmul.mubr.f32.gmra.mrb[0].mxu0 %v43
    %v111 = vpop.f32.mrb[0].mxu0
    %v112 = vadd.f32 0.0, %v111
    %v113 = vpop.f32.mrb[0].mxu0
    %114 = vdwg.mxu0
    %vm115 = vcmask 320512
    %116 = vst.msk [vmem:[#allocation7] sm:$0x3] %vm115, %v112
    // Predicated region
    $region18: #{tpu_custom_call.1} parent=1 // pred_check
      _
    $region19: #{tpu_custom_call.1} parent=1 // pred_check_branch
      %118 = sbr.rel (0) target = $region21
    $region20: #{tpu_custom_call.1} parent=1 // pred_region
      %s120 = ssub.s32 32, 32
      %121 = vsyncadd [#allocation4], %s120
      %s123 = sshll.u32 [#allocation7], 4
      %s124 = int_to_ptr.vmem [resolvable:$true] %s123
      %126 = dma.vmem_to_hbm [thread:$0]  %s124, 32, %s2, [#allocation4]
    $region21: #{tpu_custom_call.1} parent=1 // pred_fallthru
      _
    // Predicated region
    $region22: #{tpu_custom_call.1} parent=1 // pred_check
      _
    $region23: #{tpu_custom_call.1} parent=1 // pred_check_branch
      %128 = sbr.rel (0) target = $region25
    $region24: #{tpu_custom_call.1} parent=1 // pred_region
      %129 = dma.done [#allocation4], 32
    $region25: #{tpu_custom_call.1} parent=1 // pred_fallthru
      _
    %130 = vsyncpa [#allocation3], 1
    %131 = vsyncpa [#allocation6], 1
    %132 = vsyncpa [#allocation4], 1

</llo_original>
